<compile_context>
chip_gen: v6e
topology: v6e:2x2x1
jax: 0.10.0
libtpu: 0.0.40
codegen_flags: <defaults>
</compile_context>

<pallas_src>
import jax
import jax.numpy as jnp
from jax.experimental import pallas as pl
from jax.experimental.pallas import tpu as pltpu


def _hbm_copy_kernel(x_hbm, o_hbm, sem):
    # Single whole-array HBM -> HBM DMA.  No VMEM staging, no grid, no
    # vector load/store work on the TensorCore.
    cp = pltpu.make_async_copy(x_hbm, o_hbm, sem)
    cp.start()
    cp.wait()


def flatten_pallas(x: jax.Array, *, materialize: bool = True) -> jax.Array:
    """Equivalent of torch.Tensor.flatten(1) for an N-D (>=2D) tensor.

    materialize=False: return the free metadata reshape (recommended in
    production — flatten is not a compute op).
    materialize=True : run a single HBM->HBM DMA Pallas kernel producing a
    fresh buffer (useful only as an explicit copy / fusion point).
    """
    B = x.shape[0]
    F = 1
    for d in x.shape[1:]:
        F *= d

    # Free metadata reshape (matches torch flatten(1) on contiguous input).
    x2 = x.reshape(B, F)

    if not materialize:
        return x2

    itemsize = jnp.dtype(x.dtype).itemsize

    return pl.pallas_call(
        _hbm_copy_kernel,
        out_shape=jax.ShapeDtypeStruct((B, F), x.dtype),
        in_specs=[pl.BlockSpec(memory_space=pl.ANY)],
        out_specs=pl.BlockSpec(memory_space=pl.ANY),
        scratch_shapes=[pltpu.SemaphoreType.DMA(())],
        cost_estimate=pl.CostEstimate(
            flops=0,
            transcendentals=0,
            bytes_accessed=2 * B * F * itemsize,
        ),
    )(x2)


if __name__ == "__main__":
    key = jax.random.PRNGKey(0)
    # Small NCHW input consistent with the module's forward.
    x = jax.random.normal(key, (2, 4, 16, 16), dtype=jnp.float32)

    out = flatten_pallas(x)  # kernel (HBM->HBM DMA) path
    jax.block_until_ready(out)

    # Reference: plain JAX reshape (same semantics as torch x.flatten(1)).
    ref = x.reshape(x.shape[0], -1)
    assert out.shape == ref.shape, (out.shape, ref.shape)
    assert out.dtype == ref.dtype
    assert jnp.array_equal(out, ref), "Pallas flatten mismatch vs reference"

    # Also exercise the zero-cost path recommended by the perf review.
    out_free = flatten_pallas(x, materialize=False)
    jax.block_until_ready(out_free)
    assert jnp.array_equal(out_free, ref)

    print("KERNEL_OK")
</pallas_src>

<mosaic_0001>
module attributes {stable_mosaic.version = 11 : i64} {
  func.func @_hbm_copy_kernel(%arg0: memref<2x1024xf32, #tpu.memory_space<any>>, %arg1: memref<2x1024xf32, #tpu.memory_space<any>>, %arg2: memref<!tpu.dma_semaphore, #tpu.memory_space<semaphore_mem>>) attributes {dimension_semantics = [], scalar_prefetch = 0 : i64, scratch_operands = 1 : i64, tpu.core_type = #tpu.core_type<tc>} {
    tpu.enqueue_dma source(%arg0 : memref<2x1024xf32, #tpu.memory_space<any>>) target(%arg1 : memref<2x1024xf32, #tpu.memory_space<any>>) target_semaphore(%arg2 : memref<!tpu.dma_semaphore, #tpu.memory_space<semaphore_mem>>)
    tpu.wait_dma2 semaphore(%arg2 : memref<!tpu.dma_semaphore, #tpu.memory_space<semaphore_mem>>) src(%arg0 : memref<2x1024xf32, #tpu.memory_space<any>>) dst(%arg1 : memref<2x1024xf32, #tpu.memory_space<any>>)
    return
  }
}

</mosaic_0001>

<llo_original>
// kernel: tpu_custom_call.1
$region0: #{tpu_custom_call.1}
  #allocation0 [shape = 'u32[]', space=smem, size = 0x4, offset = 0x4, fixed_abs, tag = 'smem constant byte address 0x4 - core index']
  #allocation1 [shape = 'u32[144,128]{1,0:T(1,128)}', space=vmem, size = 0x12000, scoped, tag = 'internal scratch']
  #allocation2 [shape = 's32[1]{0}', space=sflag, size = 0x4, scoped, tag = 'scratch operand']
  #allocation3 [shape = 's32[]', space=sflag, size = 0x4, offset = 0, fixed_abs, tag = 'sflag constant byte address 0x0 - dummy sync flag']
  #allocation4 [shape = 'u32[0]{0}', space=smem, size = 0, offset = 0, fixed_abs, tag = 'smem constant byte address 0x0 - null']
  %s0 = inlined_call_operand.hbm [shape: f32[2,1024], index: 0, kind: input, shape index: {}]
  %s1 = inlined_call_operand.hbm [shape: f32[2,1024], index: 1, kind: output, shape index: {}]
  %s2 = sld [smem:[#allocation0]]
  $region2: #{tpu_custom_call.1} parent=0
    _
  %s4 = ssub.s32 1, %s2
  %s5 = scalar_select 0, %s4, %s2
  %s7 = sshll.u32 1, 14
  %s8 = sxor.u32 4294967295, %s7
  %12 = dma.general %s0, 256, %s1, [#allocation2], 131072, [#allocation4], 0, 0
  %s13 = smul.u32 2, 1
  %s14 = smul.u32 %s13, 8
  %s15 = sshll.u32 %s14, 4
  %16 = dma.done [#allocation2], %s15
  %17 = vsyncmov [#allocation2]
  %s18 = vpop.sfrf %17
  %p19 = scmp.eq.s32.totalorder %s18, 0
  %p20 = pneg %p19
  %22 = shalt.err (%p20)

</llo_original>
